<compile_context>
chip_gen: v7x
topology: tpu7x:2x2x1
jax: 0.10.0
libtpu: 0.0.40
codegen_flags: <defaults>
</compile_context>

<pallas_src>
import functools
import math

import jax
import jax.numpy as jnp
from jax.experimental import pallas as pl
from jax.experimental.pallas import tpu as pltpu


_DTYPE = jnp.bfloat16            # matmul operand dtype (f32 accumulation everywhere)


def _vmem_capacity_bytes():
    """Generation-aware VMEM capacity (128 MiB v5e/v6e, 64 MiB v7x); safe fallback."""
    default = 64 * 1024 * 1024
    try:
        info = pltpu.get_tpu_info()
    except Exception:
        return default
    for attr in ("vmem_capacity_bytes", "vmem_bytes", "vmem_size_bytes"):
        cap = getattr(info, attr, None)
        if cap:
            try:
                return int(cap)
            except (TypeError, ValueError):
                pass
    return default


_VMEM_CAP = _vmem_capacity_bytes()
# ~48 MiB limit on v7x (64 MiB physical VMEM), ~96 MiB on v5e/v6e (128 MiB physical).
_VMEM_LIMIT = min((_VMEM_CAP * 3) // 4, 96 * 1024 * 1024)
_BIG_VMEM = _VMEM_CAP >= 100 * 1024 * 1024
# bf16 double-buffered footprint at the max tiles below: 2*(tm*tk + tk*tn + tm*tn)*2B
# + tm*tn*4B acc ~= 4-6 MiB, comfortably under both limits.
_TM_DEF = 512 if _BIG_VMEM else 256
_TN_DEF = 512 if _BIG_VMEM else 256   # 256/512 are multiples of 256 -> v7x MXU friendly
_TK_DEF = 512


def _pick_tile(dim, target, align):
    """Largest `align`-multiple divisor of `dim` that is <= target.

    Full-extent fallback only when `dim` has no align-multiple divisor at all
    (a full block is always legal), so non-divisible shapes no longer silently
    create giant tiles that can blow the VMEM limit."""
    if dim <= target:
        return dim
    t = (min(target, dim) // align) * align
    while t >= align:
        if dim % t == 0:
            return t
        t -= align
    return dim


def _apply_act(y, act):
    """Epilogue activation, computed in f32 (v5e has no bf16 VPU/EUP)."""
    if act == "relu":
        return jnp.maximum(y, 0.0)
    if act == "gelu":
        # exact erf GELU, matching HF bert-base-cased
        return 0.5 * y * (1.0 + jax.lax.erf(y * (1.0 / math.sqrt(2.0))))
    if act == "tanh":
        return jnp.tanh(y)
    return y


# ----------------------------- Pallas kernels ------------------------------ #

def _linear_kernel(x_ref, w_ref, b_ref, o_ref, acc_ref, *, act):
    """Tiled o = act(x @ w + b); bf16 operands, f32 VMEM accumulator over k axis."""
    k = pl.program_id(2)

    @pl.when(k == 0)
    def _():
        acc_ref[...] = jnp.zeros_like(acc_ref)

    acc_ref[...] += jnp.dot(x_ref[...], w_ref[...],
                            preferred_element_type=jnp.float32)

    @pl.when(k == pl.num_programs(2) - 1)
    def _():
        y = acc_ref[...] + b_ref[...].astype(jnp.float32)
        o_ref[...] = _apply_act(y, act).astype(o_ref.dtype)


def linear(x, w, b, act="none", tm=None, tn=None, tk=None):
    M, K = x.shape
    N = w.shape[1]
    tm = _pick_tile(M, tm or _TM_DEF, 8)
    tn = _pick_tile(N, tn or _TN_DEF, 128)
    tk = _pick_tile(K, tk or _TK_DEF, 128)
    grid = (M // tm, N // tn, K // tk)
    # TODO(synk): if profiling shows exposed weight DMA on large-K layers (ffn2),
    # add pipeline_mode=pl.Buffered(3) on the w BlockSpec on v5e/v6e (skip on v7x).
    return pl.pallas_call(
        functools.partial(_linear_kernel, act=act),
        out_shape=jax.ShapeDtypeStruct((M, N), x.dtype),
        grid=grid,
        in_specs=[
            pl.BlockSpec((tm, tk), lambda i, j, k: (i, k)),
            pl.BlockSpec((tk, tn), lambda i, j, k: (k, j)),
            pl.BlockSpec((1, tn), lambda i, j, k: (0, j)),
        ],
        out_specs=pl.BlockSpec((tm, tn), lambda i, j, k: (i, j)),
        scratch_shapes=[pltpu.VMEM((tm, tn), jnp.float32)],
        compiler_params=pltpu.CompilerParams(
            dimension_semantics=("parallel", "parallel", "arbitrary"),
            vmem_limit_bytes=_VMEM_LIMIT),
    )(x, w, b.reshape(1, N))


def linear_lane_padded(x, w, b, act="none"):
    """Pad N up to a 128-lane multiple so output stores are lane-dense (unmasked vst);
    the zero padding is sliced off in XLA afterwards."""
    N = w.shape[1]
    Np = ((N + 127) // 128) * 128
    if Np != N:
        w = jnp.pad(w, ((0, 0), (0, Np - N)))
        b = jnp.pad(b, ((0, Np - N),))
    y = linear(x, w, b, act=act)
    return y[:, :N] if Np != N else y


def _linear_res_ln_kernel(x_ref, w_ref, b_ref, res_ref, g_ref, be_ref,
                          o_ref, acc_ref, *, eps):
    """Fused o = LayerNorm(res + x @ w + b).  N (=hidden) is untiled so the full LN
    reduction axis is resident in the output tile.  bf16 operands, f32 epilogue."""
    k = pl.program_id(1)

    @pl.when(k == 0)
    def _():
        acc_ref[...] = jnp.zeros_like(acc_ref)

    acc_ref[...] += jnp.dot(x_ref[...], w_ref[...],
                            preferred_element_type=jnp.float32)

    @pl.when(k == pl.num_programs(1) - 1)
    def _():
        y = acc_ref[...] + b_ref[...].astype(jnp.float32) \
            + res_ref[...].astype(jnp.float32)
        mu = jnp.mean(y, axis=-1, keepdims=True)
        var = jnp.mean(jnp.square(y - mu), axis=-1, keepdims=True)
        y = (y - mu) * jax.lax.rsqrt(var + eps)
        y = y * g_ref[...].astype(jnp.float32) + be_ref[...].astype(jnp.float32)
        o_ref[...] = y.astype(o_ref.dtype)


def linear_res_ln(x, w, b, res, gamma, beta, eps=1e-12, tm=None, tk=None):
    M, K = x.shape
    N = w.shape[1]
    tm = _pick_tile(M, tm or _TM_DEF, 8)
    tk = _pick_tile(K, tk or _TK_DEF, 128)
    grid = (M // tm, K // tk)
    return pl.pallas_call(
        functools.partial(_linear_res_ln_kernel, eps=eps),
        out_shape=jax.ShapeDtypeStruct((M, N), x.dtype),
        grid=grid,
        in_specs=[
            pl.BlockSpec((tm, tk), lambda i, k: (i, k)),
            pl.BlockSpec((tk, N), lambda i, k: (k, 0)),
            pl.BlockSpec((1, N), lambda i, k: (0, 0)),
            pl.BlockSpec((tm, N), lambda i, k: (i, 0)),
            pl.BlockSpec((1, N), lambda i, k: (0, 0)),
            pl.BlockSpec((1, N), lambda i, k: (0, 0)),
        ],
        out_specs=pl.BlockSpec((tm, N), lambda i, k: (i, 0)),
        scratch_shapes=[pltpu.VMEM((tm, N), jnp.float32)],
        compiler_params=pltpu.CompilerParams(
            dimension_semantics=("parallel", "arbitrary"),
            vmem_limit_bytes=_VMEM_LIMIT),
    )(x, w, b.reshape(1, N), res, gamma.reshape(1, N), beta.reshape(1, N))


def _emb_ln_kernel(we_ref, pe_ref, te_ref, g_ref, b_ref, o_ref, *, eps):
    """Fused x = LayerNorm(word_emb + pos_emb + type_emb) for one batch element.
    The elementwise sum never round-trips to HBM."""
    x = (we_ref[0].astype(jnp.float32)
         + pe_ref[...].astype(jnp.float32)
         + te_ref[...].astype(jnp.float32))
    mu = jnp.mean(x, axis=-1, keepdims=True)
    var = jnp.mean(jnp.square(x - mu), axis=-1, keepdims=True)
    y = (x - mu) * jax.lax.rsqrt(var + eps)
    y = y * g_ref[...].astype(jnp.float32) + b_ref[...].astype(jnp.float32)
    o_ref[0] = y.astype(o_ref.dtype)


def embed_add_layernorm(we, pe, te, gamma, beta, eps=1e-12):
    B, S, H = we.shape
    return pl.pallas_call(
        functools.partial(_emb_ln_kernel, eps=eps),
        out_shape=jax.ShapeDtypeStruct((B, S, H), we.dtype),
        grid=(B,),
        in_specs=[
            pl.BlockSpec((1, S, H), lambda b: (b, 0, 0)),
            pl.BlockSpec((S, H), lambda b: (0, 0)),
            pl.BlockSpec((1, H), lambda b: (0, 0)),
            pl.BlockSpec((1, H), lambda b: (0, 0)),
            pl.BlockSpec((1, H), lambda b: (0, 0)),
        ],
        out_specs=pl.BlockSpec((1, S, H), lambda b: (b, 0, 0)),
        compiler_params=pltpu.CompilerParams(
            dimension_semantics=("parallel",),
            vmem_limit_bytes=_VMEM_LIMIT),
    )(we, pe, te, gamma.reshape(1, H), beta.reshape(1, H))


def _attention_kernel(qkv_ref, mask_ref, o_ref, *, nh, hd):
    """One batch element, all heads.  Per head:
         s   = q @ k^T + mask_bias        (lax.dot_general -> no k.T XLU transpose)
         ctx = softmax(s) @ v              (1/row_sum applied AFTER the PV matmul,
                                            on the (S, hd) result, via EUP reciprocal)
    The 1/sqrt(hd) scale is folded into the Q projection weights at init, and each
    head's context is stored straight into its o_ref columns (no concatenate, so only
    one head's intermediates stay live).  Mask bias is built in-kernel from the
    (1, S) mask (no (B*nh, S, S) bias tensor)."""
    H = nh * hd
    bias = (1.0 - mask_ref[0].astype(jnp.float32)) * -1e4     # (1, S) over keys
    # TODO(synk): at bert-base scale (nh=12, hd=64) hoist head pairs onto a grid axis
    # so every slice/store is a 128-lane block; at this toy config H=32 fits one vreg.
    for h in range(nh):
        q = qkv_ref[0, :, h * hd:(h + 1) * hd]                        # (S, hd) bf16
        k = qkv_ref[0, :, H + h * hd:H + (h + 1) * hd]
        v = qkv_ref[0, :, 2 * H + h * hd:2 * H + (h + 1) * hd]
        s = jax.lax.dot_general(q, k, (((1,), (1,)), ((), ())),
                                preferred_element_type=jnp.float32) + bias
        m = jnp.max(s, axis=-1, keepdims=True)
        p = jnp.exp(s - m)
        l = jnp.sum(p, axis=-1, keepdims=True)                        # (S, 1)
        ctx = jnp.dot(p.astype(v.dtype), v, preferred_element_type=jnp.float32)
        ctx = ctx * pl.reciprocal(l, approx=True)                     # scale (S,hd) only
        o_ref[0, :, h * hd:(h + 1) * hd] = ctx.astype(o_ref.dtype)


def attention(qkv, mask3, *, nh, hd):
    B, S, H3 = qkv.shape
    H = nh * hd
    return pl.pallas_call(
        functools.partial(_attention_kernel, nh=nh, hd=hd),
        out_shape=jax.ShapeDtypeStruct((B, S, H), qkv.dtype),
        grid=(B,),
        in_specs=[
            pl.BlockSpec((1, S, H3), lambda b: (b, 0, 0)),
            pl.BlockSpec((1, 1, S), lambda b: (b, 0, 0)),
        ],
        out_specs=pl.BlockSpec((1, S, H), lambda b: (b, 0, 0)),
        compiler_params=pltpu.CompilerParams(
            dimension_semantics=("parallel",),
            vmem_limit_bytes=_VMEM_LIMIT),
    )(qkv, mask3)


# ----------------------- deterministic parameter init ---------------------- #

def _dense_params(key, fan_in, fan_out):
    w = (jax.random.normal(key, (fan_in, fan_out), jnp.float32) * 0.02).astype(_DTYPE)
    b = jnp.zeros((fan_out,), _DTYPE)
    return {"w": w, "b": b}


def init_params(key, cfg):
    H, F, L = cfg["hidden"], cfg["ffn"], cfg["layers"]
    scale = 1.0 / math.sqrt(cfg["head_dim"])
    n_keys = 5 + 6 * L                 # exact count: no key-stream exhaustion
    keys = jax.random.split(key, n_keys)
    ki = iter(keys)

    def emb(k, n):
        return (jax.random.normal(k, (n, H), jnp.float32) * 0.02).astype(_DTYPE)

    params = {
        "word_emb": emb(next(ki), cfg["vocab"]),
        "pos_emb": emb(next(ki), cfg["max_pos"]),
        "type_emb": emb(next(ki), 2),
        "emb_ln_g": jnp.ones((H,), _DTYPE),
        "emb_ln_b": jnp.zeros((H,), _DTYPE),
        "pooler": _dense_params(next(ki), H, H),
        "trans": _dense_params(next(ki), H, cfg["middle_hidden"]),
        "layers": [],
    }
    for _ in range(L):
        q = _dense_params(next(ki), H, H)
        k = _dense_params(next(ki), H, H)
        v = _dense_params(next(ki), H, H)
        layer = {
            # fused QKV projection (H, 3H); the 1/sqrt(hd) attention scale is folded
            # into the Q columns so the attention kernel never scales the (S,S) scores
            "qkv": {"w": jnp.concatenate([q["w"] * scale, k["w"], v["w"]], axis=1),
                    "b": jnp.concatenate([q["b"] * scale, k["b"], v["b"]], axis=0)},
            "o": _dense_params(next(ki), H, H),
            "ffn1": _dense_params(next(ki), H, F),
            "ffn2": _dense_params(next(ki), F, H),
            "ln1_g": jnp.ones((H,), _DTYPE),
            "ln1_b": jnp.zeros((H,), _DTYPE),
            "ln2_g": jnp.ones((H,), _DTYPE),
            "ln2_b": jnp.zeros((H,), _DTYPE),
        }
        params["layers"].append(layer)
    return params


# ------------------------------ forward pass ------------------------------- #

def text_model_forward(params, bert_inputs, masks, cfg):
    """Returns (trans(hidden_state), trans(pooler_out)) like TextModel.forward."""
    B, S = bert_inputs.shape
    H, nh, hd = cfg["hidden"], cfg["heads"], cfg["head_dim"]

    # --- BERT embeddings: gather is XLA glue; (word + pos + type) sum is fused into
    #     the LayerNorm kernel (no HBM round trip of the elementwise intermediate) ---
    we = jnp.take(params["word_emb"], bert_inputs, axis=0)        # (B,S,H) bf16
    pe = params["pos_emb"][:S]                                    # (S,H)
    te = params["type_emb"][0:1]                                  # (1,H) token_type_id=0
    x = embed_add_layernorm(we, pe, te, params["emb_ln_g"], params["emb_ln_b"])
    x = x.reshape(B * S, H)
    # dropout: eval mode -> identity

    mask3 = masks.astype(jnp.float32).reshape(B, 1, S)            # broadcast in-kernel

    for layer in params["layers"]:
        # fused QKV projection: one bf16 matmul, output (B*S, 3H), scale pre-folded
        qkv = linear(x, layer["qkv"]["w"], layer["qkv"]["b"])
        # attention over all heads per batch element; context comes back already in
        # merged-heads (B, S, H) layout -> no host transposes
        ctx = attention(qkv.reshape(B, S, 3 * H), mask3, nh=nh, hd=hd)
        # output projection fused with residual add + LayerNorm
        x = linear_res_ln(ctx.reshape(B * S, H), layer["o"]["w"], layer["o"]["b"],
                          x, layer["ln1_g"], layer["ln1_b"])
        # FFN: exact-erf GELU matmul, then ffn2 fused with residual add + LayerNorm
        h = linear(x, layer["ffn1"]["w"], layer["ffn1"]["b"], act="gelu")
        x = linear_res_ln(h, layer["ffn2"]["w"], layer["ffn2"]["b"],
                          x, layer["ln2_g"], layer["ln2_b"])

    hidden_state = x                                              # (B*S, H)
    cls = hidden_state.reshape(B, S, H)[:, 0, :]                  # (B, H)
    pooler_out = linear(cls, params["pooler"]["w"], params["pooler"]["b"], act="tanh")

    # --- self.trans = Dropout(0.2) [eval: identity] -> Linear(H, middle) -> ReLU ---
    # hidden_state and pooler_out are stacked into ONE lane-padded matmul: lane-dense
    # output stores (N padded to a 128 multiple, sliced after), no tiny M=B matmul.
    stacked = jnp.concatenate([hidden_state, pooler_out], axis=0)  # (B*S + B, H)
    trans_all = linear_lane_padded(stacked, params["trans"]["w"], params["trans"]["b"],
                                   act="relu")
    mh = cfg["middle_hidden"]
    trans_hidden = trans_all[:B * S].reshape(B, S, mh)
    trans_pool = trans_all[B * S:]

    # TODO(synk): pretrained 'bert-base-cased' weights cannot be loaded; weights are
    # deterministic synthetic initializations with a reduced config.
    return trans_hidden, trans_pool


# ---------------------------------- main ----------------------------------- #

if __name__ == "__main__":
    cfg = {
        "vocab": 64,
        "max_pos": 16,
        "hidden": 32,       # stands in for 768
        "heads": 2,
        "head_dim": 16,
        "ffn": 64,
        "layers": 2,
        "middle_hidden": 16,
    }
    B, S = 2, 8

    key = jax.random.PRNGKey(0)
    k_params, k_ids = jax.random.split(key)
    params = init_params(k_params, cfg)

    bert_inputs = jax.random.randint(k_ids, (B, S), 0, cfg["vocab"], dtype=jnp.int32)
    masks = jnp.array([[1] * S, [1] * (S - 2) + [0, 0]], dtype=jnp.int32)

    trans_hidden, trans_pool = text_model_forward(params, bert_inputs, masks, cfg)
    jax.block_until_ready((trans_hidden, trans_pool))

    assert trans_hidden.shape == (B, S, cfg["middle_hidden"])
    assert trans_pool.shape == (B, cfg["middle_hidden"])
    assert bool(jnp.all(jnp.isfinite(trans_hidden.astype(jnp.float32))))
    assert bool(jnp.all(jnp.isfinite(trans_pool.astype(jnp.float32))))
    print("KERNEL_OK")
</pallas_src>

<mosaic_0001>
module attributes {stable_mosaic.version = 11 : i64} {
  func.func @_emb_ln_kernel(%arg0: i32, %arg1: memref<1x8x32xbf16, #tpu.memory_space<vmem>>, %arg2: memref<8x32xbf16, #tpu.memory_space<vmem>>, %arg3: memref<1x32xbf16, #tpu.memory_space<vmem>>, %arg4: memref<1x32xbf16, #tpu.memory_space<vmem>>, %arg5: memref<1x32xbf16, #tpu.memory_space<vmem>>, %arg6: memref<1x8x32xbf16, #tpu.memory_space<vmem>>) attributes {dimension_semantics = [#tpu.dimension_semantics<parallel>], iteration_bounds = array<i64: 2>, scalar_prefetch = 0 : i64, scratch_operands = 0 : i64, tpu.core_type = #tpu.core_type<tc>, window_params = [{transform_indices = @transform_0, window_bounds = array<i64: 1, 8, 32>}, {pipeline_mode = #tpu.pipeline_mode<synchronous>, transform_indices = @transform_1, window_bounds = array<i64: 8, 32>}, {pipeline_mode = #tpu.pipeline_mode<synchronous>, transform_indices = @transform_2, window_bounds = array<i64: 1, 32>}, {pipeline_mode = #tpu.pipeline_mode<synchronous>, transform_indices = @transform_3, window_bounds = array<i64: 1, 32>}, {pipeline_mode = #tpu.pipeline_mode<synchronous>, transform_indices = @transform_4, window_bounds = array<i64: 1, 32>}, {transform_indices = @transform_5, window_bounds = array<i64: 1, 8, 32>}]} {
    %c0 = arith.constant 0 : index
    %c0_0 = arith.constant 0 : index
    %c0_1 = arith.constant 0 : index
    %0 = vector.load %arg1[%c0, %c0_0, %c0_1] : memref<1x8x32xbf16, #tpu.memory_space<vmem>>, vector<1x8x32xbf16>
    %1 = vector.shape_cast %0 : vector<1x8x32xbf16> to vector<8x32xbf16>
    %2 = arith.extf %1 : vector<8x32xbf16> to vector<8x32xf32>
    %c0_2 = arith.constant 0 : index
    %c0_3 = arith.constant 0 : index
    %3 = vector.load %arg2[%c0_2, %c0_3] : memref<8x32xbf16, #tpu.memory_space<vmem>>, vector<8x32xbf16>
    %4 = arith.extf %3 : vector<8x32xbf16> to vector<8x32xf32>
    %5 = arith.addf %2, %4 : vector<8x32xf32>
    %c0_4 = arith.constant 0 : index
    %c0_5 = arith.constant 0 : index
    %6 = vector.load %arg3[%c0_4, %c0_5] : memref<1x32xbf16, #tpu.memory_space<vmem>>, vector<1x32xbf16>
    %7 = arith.extf %6 : vector<1x32xbf16> to vector<1x32xf32>
    %8 = vector.broadcast %7 : vector<1x32xf32> to vector<8x32xf32>
    %9 = arith.addf %5, %8 : vector<8x32xf32>
    %cst = arith.constant dense<0.000000e+00> : vector<8xf32>
    %10 = vector.multi_reduction <add>, %9, %cst [1] : vector<8x32xf32> to vector<8xf32>
    %11 = vector.shape_cast %10 : vector<8xf32> to vector<8x1xf32>
    %cst_6 = arith.constant 3.200000e+01 : f32
    %12 = vector.broadcast %cst_6 : f32 to vector<8x1xf32>
    %13 = arith.divf %11, %12 : vector<8x1xf32>
    %14 = vector.broadcast %13 : vector<8x1xf32> to vector<8x32xf32>
    %15 = arith.subf %9, %14 : vector<8x32xf32>
    %16 = arith.mulf %15, %15 : vector<8x32xf32>
    %cst_7 = arith.constant dense<0.000000e+00> : vector<8xf32>
    %17 = vector.multi_reduction <add>, %16, %cst_7 [1] : vector<8x32xf32> to vector<8xf32>
    %18 = vector.shape_cast %17 : vector<8xf32> to vector<8x1xf32>
    %cst_8 = arith.constant 3.200000e+01 : f32
    %19 = vector.broadcast %cst_8 : f32 to vector<8x1xf32>
    %20 = arith.divf %18, %19 : vector<8x1xf32>
    %21 = vector.broadcast %13 : vector<8x1xf32> to vector<8x32xf32>
    %22 = arith.subf %9, %21 : vector<8x32xf32>
    %cst_9 = arith.constant 9.99999996E-13 : f32
    %23 = vector.broadcast %cst_9 : f32 to vector<8x1xf32>
    %24 = arith.addf %20, %23 : vector<8x1xf32>
    %25 = math.rsqrt %24 : vector<8x1xf32>
    %26 = vector.broadcast %25 : vector<8x1xf32> to vector<8x32xf32>
    %27 = arith.mulf %22, %26 : vector<8x32xf32>
    %c0_10 = arith.constant 0 : index
    %c0_11 = arith.constant 0 : index
    %28 = vector.load %arg4[%c0_10, %c0_11] : memref<1x32xbf16, #tpu.memory_space<vmem>>, vector<1x32xbf16>
    %29 = arith.extf %28 : vector<1x32xbf16> to vector<1x32xf32>
    %30 = vector.broadcast %29 : vector<1x32xf32> to vector<8x32xf32>
    %31 = arith.mulf %27, %30 : vector<8x32xf32>
    %c0_12 = arith.constant 0 : index
    %c0_13 = arith.constant 0 : index
    %32 = vector.load %arg5[%c0_12, %c0_13] : memref<1x32xbf16, #tpu.memory_space<vmem>>, vector<1x32xbf16>
    %33 = arith.extf %32 : vector<1x32xbf16> to vector<1x32xf32>
    %34 = vector.broadcast %33 : vector<1x32xf32> to vector<8x32xf32>
    %35 = arith.addf %31, %34 : vector<8x32xf32>
    %36 = arith.truncf %35 : vector<8x32xf32> to vector<8x32xbf16>
    %c0_14 = arith.constant 0 : index
    %c0_15 = arith.constant 0 : index
    %c0_16 = arith.constant 0 : index
    %37 = vector.load %arg6[%c0_14, %c0_15, %c0_16] : memref<1x8x32xbf16, #tpu.memory_space<vmem>>, vector<1x8x32xbf16>
    %38 = vector.shape_cast %37 : vector<1x8x32xbf16> to vector<8x32xbf16>
    %39 = vector.shape_cast %36 : vector<8x32xbf16> to vector<1x8x32xbf16>
    tpu.vector_store %arg6[%c0_14, %c0_15, %c0_16], %39 {strides = array<i32>} : memref<1x8x32xbf16, #tpu.memory_space<vmem>>, vector<1x8x32xbf16>,
    return
  }
  func.func @transform_0(%arg0: i32) -> (i32, i32, i32) {
    %c0_i32 = arith.constant 0 : i32
    %c0_i32_0 = arith.constant 0 : i32
    %c0_i32_1 = arith.constant 0 : i32
    return %arg0, %c0_i32, %c0_i32_0 : i32, i32, i32
  }
  func.func @transform_1(%arg0: i32) -> (i32, i32) {
    %c0_i32 = arith.constant 0 : i32
    %c0_i32_0 = arith.constant 0 : i32
    %c0_i32_1 = arith.constant 0 : i32
    return %c0_i32, %c0_i32_0 : i32, i32
  }
  func.func @transform_2(%arg0: i32) -> (i32, i32) {
    %c0_i32 = arith.constant 0 : i32
    %c0_i32_0 = arith.constant 0 : i32
    %c0_i32_1 = arith.constant 0 : i32
    return %c0_i32, %c0_i32_0 : i32, i32
  }
  func.func @transform_3(%arg0: i32) -> (i32, i32) {
    %c0_i32 = arith.constant 0 : i32
    %c0_i32_0 = arith.constant 0 : i32
    %c0_i32_1 = arith.constant 0 : i32
    return %c0_i32, %c0_i32_0 : i32, i32
  }
  func.func @transform_4(%arg0: i32) -> (i32, i32) {
    %c0_i32 = arith.constant 0 : i32
    %c0_i32_0 = arith.constant 0 : i32
    %c0_i32_1 = arith.constant 0 : i32
    return %c0_i32, %c0_i32_0 : i32, i32
  }
  func.func @transform_5(%arg0: i32) -> (i32, i32, i32) {
    %c0_i32 = arith.constant 0 : i32
    %c0_i32_0 = arith.constant 0 : i32
    %c0_i32_1 = arith.constant 0 : i32
    return %arg0, %c0_i32, %c0_i32_0 : i32, i32, i32
  }
}

</mosaic_0001>

<llo_original>
// kernel: tpu_custom_call.1
$region0: #{tpu_custom_call.1}
  #allocation0 [shape = 'u32[]', space=smem, size = 0x4, offset = 0x4, fixed_abs, tag = 'smem constant byte address 0x4 - core index']
  #allocation1 [shape = 'u32[144,128]{1,0:T(1,128)}', space=vmem, size = 0x12000, scoped, tag = 'internal scratch']
  %s0 = inlined_call_operand.hbm [shape: bf16[2,8,32], index: 0, kind: input, shape index: {}]
  %s1 = inlined_call_operand.hbm [shape: bf16[8,32], index: 1, kind: input, shape index: {}]
  %s2 = inlined_call_operand.vmem [shape: bf16[1,32], index: 2, kind: input, shape index: {}]
  %s3 = inlined_call_operand.vmem [shape: bf16[1,32], index: 3, kind: input, shape index: {}]
  %s4 = inlined_call_operand.vmem [shape: bf16[1,32], index: 4, kind: input, shape index: {}]
  %s5 = inlined_call_operand.hbm [shape: bf16[2,8,32], index: 5, kind: output, shape index: {}]
  %s6 = sld [smem:[#allocation0]]
  $region61: #{tpu_custom_call.1} parent=0
    _
  %s8 = ssub.s32 1, %s6
  %s9 = scalar_select 0, %s8, %s6
  $region1: #{tpu_custom_call.1} parent=0
    #allocation2 [shape = 'u8[4096]{0}', space=vmem, size = 0x1000, scoped, tag = 'input window, operand 0']
    #allocation3 [shape = 's32[2]{0}', space=sflag, size = 0x8, scoped, tag = 'scoped memory for tpu_custom_call.1']
    #allocation4 [shape = 's32[2]{0}', space=sflag, size = 0x8, scoped, tag = 'scoped memory for tpu_custom_call.1']
    #allocation5 [shape = 'u8[2048]{0}', space=vmem, size = 0x800, scoped, tag = 'input window, operand 1, single buffered']
    #allocation6 [shape = 's32[1]{0}', space=sflag, size = 0x4, scoped, tag = 'scoped memory for tpu_custom_call.1']
    #allocation7 [shape = 'u8[4096]{0}', space=vmem, size = 0x1000, scoped, tag = 'output window, operand 0']
    %10 = vsyncpa [#allocation3], 0
    %s11 = scalar_lea.sflag [#allocation3], 1
    %12 = vsyncpa %s11, 0
    %13 = vsyncpa [#allocation6], 0
    %14 = vsyncpa [#allocation4], 0
    %s15 = scalar_lea.sflag [#allocation4], 1
    %16 = vsyncpa %s15, 0
    loop: start=0, step=1, limit=4
    $region2: #{tpu_custom_call.1} parent=1 // loop_pre_header
      _
    $region3: #{tpu_custom_call.1} parent=1 // loop_header
      %s18 = sphi 0, %s22
      %p19 = scmp.ge.s32.totalorder %s18, 4
      %s28 = sphi 0, %s30
      %s31 = sphi 0, %s28
      %s32 = sphi 0, %s31
      %s48 = sphi 0, %s32
      %s52 = sphi 0, %s52
      %s54 = sphi 0, %s52
      %s55 = sphi 0, %s54
      %s69 = sphi 0, %s55
      %s73 = sphi 0, %s73
      %s75 = sphi 0, %s73
      %s76 = sphi 0, %s75
      %s90 = sphi 0, %s76
      %s94 = sphi 0, %s94
      %s96 = sphi 0, %s94
      %s97 = sphi 0, %s96
      %s111 = sphi 0, %s97
      %s115 = sphi 0, %s115
      %s117 = sphi 0, %s115
      %s118 = sphi 0, %s117
      %s132 = sphi 0, %s118
      %s138 = sphi 0, %s140
      %s141 = sphi 0, %s138
      %s142 = sphi 0, %s141
      %s158 = sphi 0, %s142
    $region4: #{tpu_custom_call.1} parent=1 // loop_header_branch
      %21 = sbr.rel (%p19) target = $region8
    $region5: #{tpu_custom_call.1} parent=1 // loop_body
      %s23 = ssub.s32 %s18, 1
      %s24 = ssub.s32 %s18, 2
      %s25 = sadd.s32 %s18, 1
      %s26 = ssub.s32 %s18, %s25
      %p27 = scmp.eq.s32.totalorder %s26, 0
      %s29 = sadd.s32 %s28, 1
      %s30 = scalar_select %p27, %s28, %s29
      %p33 = pneg %p27
      %p34 = scmp.eq.s32.totalorder %s18, 1
      %p35 = por %p33, %p34
      %p36 = scmp.ne.s32.totalorder %s28, %s31
      %p37 = scmp.eq.s32.totalorder %s18, 0
      %p38 = por %p36, %p37
      %p39 = scmp.ne.s32.totalorder %s28, %s31
      %p40 = scmp.eq.s32.totalorder %s23, 1
      %p41 = por %p39, %p40
      %p42 = scmp.ne.s32.totalorder %s31, %s32
      %p43 = scmp.eq.s32.totalorder %s23, 0
      %p44 = por %p42, %p43
      %p45 = scmp.ne.s32.totalorder %s31, %s32
      %p46 = scmp.eq.s32.totalorder %s24, 1
      %p47 = por %p45, %p46
      %p49 = scmp.ne.s32.totalorder %s32, %s48
      %p50 = scmp.eq.s32.totalorder %s24, 0
      %p51 = por %p49, %p50
      %s53 = sadd.s32 %s52, 1
      %p56 = scmp.eq.s32.totalorder %s18, 1
      %p57 = scmp.ne.s32.totalorder %s52, %s54
      %p58 = scmp.eq.s32.totalorder %s18, 0
      %p59 = por %p57, %p58
      %p60 = scmp.ne.s32.totalorder %s52, %s54
      %p61 = scmp.eq.s32.totalorder %s23, 1
      %p62 = por %p60, %p61
      %p63 = scmp.ne.s32.totalorder %s54, %s55
      %p64 = scmp.eq.s32.totalorder %s23, 0
      %p65 = por %p63, %p64
      %p66 = scmp.ne.s32.totalorder %s54, %s55
      %p67 = scmp.eq.s32.totalorder %s24, 1
      %p68 = por %p66, %p67
      %p70 = scmp.ne.s32.totalorder %s55, %s69
      %p71 = scmp.eq.s32.totalorder %s24, 0
      %p72 = por %p70, %p71
      %s74 = sadd.s32 %s73, 1
      %p77 = scmp.eq.s32.totalorder %s18, 1
      %p78 = scmp.ne.s32.totalorder %s73, %s75
      %p79 = scmp.eq.s32.totalorder %s18, 0
      %p80 = por %p78, %p79
      %p81 = scmp.ne.s32.totalorder %s73, %s75
      %p82 = scmp.eq.s32.totalorder %s23, 1
      %p83 = por %p81, %p82
      %p84 = scmp.ne.s32.totalorder %s75, %s76
      %p85 = scmp.eq.s32.totalorder %s23, 0
      %p86 = por %p84, %p85
      %p87 = scmp.ne.s32.totalorder %s75, %s76
      %p88 = scmp.eq.s32.totalorder %s24, 1
      %p89 = por %p87, %p88
      %p91 = scmp.ne.s32.totalorder %s76, %s90
      %p92 = scmp.eq.s32.totalorder %s24, 0
      %p93 = por %p91, %p92
      %s95 = sadd.s32 %s94, 1
      %p98 = scmp.eq.s32.totalorder %s18, 1
      %p99 = scmp.ne.s32.totalorder %s94, %s96
      %p100 = scmp.eq.s32.totalorder %s18, 0
      %p101 = por %p99, %p100
      %p102 = scmp.ne.s32.totalorder %s94, %s96
      %p103 = scmp.eq.s32.totalorder %s23, 1
      %p104 = por %p102, %p103
      %p105 = scmp.ne.s32.totalorder %s96, %s97
      %p106 = scmp.eq.s32.totalorder %s23, 0
      %p107 = por %p105, %p106
      %p108 = scmp.ne.s32.totalorder %s96, %s97
      %p109 = scmp.eq.s32.totalorder %s24, 1
      %p110 = por %p108, %p109
      %p112 = scmp.ne.s32.totalorder %s97, %s111
      %p113 = scmp.eq.s32.totalorder %s24, 0
      %p114 = por %p112, %p113
      %s116 = sadd.s32 %s115, 1
      %p119 = scmp.eq.s32.totalorder %s18, 1
      %p120 = scmp.ne.s32.totalorder %s115, %s117
      %p121 = scmp.eq.s32.totalorder %s18, 0
      %p122 = por %p120, %p121
      %p123 = scmp.ne.s32.totalorder %s115, %s117
      %p124 = scmp.eq.s32.totalorder %s23, 1
      %p125 = por %p123, %p124
      %p126 = scmp.ne.s32.totalorder %s117, %s118
      %p127 = scmp.eq.s32.totalorder %s23, 0
      %p128 = por %p126, %p127
      %p129 = scmp.ne.s32.totalorder %s117, %s118
      %p130 = scmp.eq.s32.totalorder %s24, 1
      %p131 = por %p129, %p130
      %p133 = scmp.ne.s32.totalorder %s118, %s132
      %p134 = scmp.eq.s32.totalorder %s24, 0
      %p135 = por %p133, %p134
      %s136 = ssub.s32 %s18, %s25
      %p137 = scmp.eq.s32.totalorder %s136, 0
      %s139 = sadd.s32 %s138, 1
      %s140 = scalar_select %p137, %s138, %s139
      %p143 = pneg %p137
      %p144 = scmp.eq.s32.totalorder %s18, 1
      %p145 = por %p143, %p144
      %p146 = scmp.ne.s32.totalorder %s138, %s141
      %p147 = scmp.eq.s32.totalorder %s18, 0
      %p148 = por %p146, %p147
      %p149 = scmp.ne.s32.totalorder %s138, %s141
      %p150 = scmp.eq.s32.totalorder %s23, 1
      %p151 = por %p149, %p150
      %p152 = scmp.ne.s32.totalorder %s141, %s142
      %p153 = scmp.eq.s32.totalorder %s23, 0
      %p154 = por %p152, %p153
      %p155 = scmp.ne.s32.totalorder %s141, %s142
      %p156 = scmp.eq.s32.totalorder %s24, 1
      %p157 = por %p155, %p156
      %p159 = scmp.ne.s32.totalorder %s142, %s158
      %p160 = scmp.eq.s32.totalorder %s24, 0
      %p161 = por %p159, %p160
      %p162 = scmp.le.s32.totalorder 1, %s18
      %p163 = scmp.lt.s32.totalorder %s18, 3
      %p164 = pnand %p162, %p163
      %p165 = pneg %p164
      // Predicated region
      $region9: #{tpu_custom_call.1} parent=5 // pred_check
        _
      $region10: #{tpu_custom_call.1} parent=5 // pred_check_branch
        %167 = sbr.rel (%p164) target = $region12
      $region11: #{tpu_custom_call.1} parent=5 // pred_region
        %s168 = ssub.s32 %s18, 1
        // Predicated region
        $region13: #{tpu_custom_call.1} parent=11 // pred_check
          %p169 = pneg %p65
        $region14: #{tpu_custom_call.1} parent=11 // pred_check_branch
          %171 = sbr.rel (%p169) target = $region16
        $region15: #{tpu_custom_call.1} parent=11 // pred_region
          %s173 = ssub.s32 64, 64
          %174 = vsyncadd [#allocation6], %s173
          %s176 = sshll.u32 [#allocation5], 4
          %s177 = int_to_ptr.vmem [resolvable:$true] %s176
          %179 = dma.hbm_to_vmem [thread:$0]  %s1, 64, %s177, [#allocation6]
        $region16: #{tpu_custom_call.1} parent=11 // pred_fallthru
          _
        // Predicated region
        $region17: #{tpu_custom_call.1} parent=11 // pred_check
          %p180 = pneg %p86
        $region18: #{tpu_custom_call.1} parent=11 // pred_check_branch
          %182 = sbr.rel (%p180) target = $region20
        $region19: #{tpu_custom_call.1} parent=11 // pred_region
          _
        $region20: #{tpu_custom_call.1} parent=11 // pred_fallthru
          _
        // Predicated region
        $region21: #{tpu_custom_call.1} parent=11 // pred_check
          %p183 = pneg %p107
        $region22: #{tpu_custom_call.1} parent=11 // pred_check_branch
          %185 = sbr.rel (%p183) target = $region24
        $region23: #{tpu_custom_call.1} parent=11 // pred_region
          _
        $region24: #{tpu_custom_call.1} parent=11 // pred_fallthru
          _
        // Predicated region
        $region25: #{tpu_custom_call.1} parent=11 // pred_check
          %p186 = pneg %p128
        $region26: #{tpu_custom_call.1} parent=11 // pred_check_branch
          %188 = sbr.rel (%p186) target = $region28
        $region27: #{tpu_custom_call.1} parent=11 // pred_region
          _
        $region28: #{tpu_custom_call.1} parent=11 // pred_fallthru
          _
      $region12: #{tpu_custom_call.1} parent=5 // pred_fallthru
        _
      %p189 = scmp.lt.s32.totalorder %s18, 2
      // Predicated region
      $region29: #{tpu_custom_call.1} parent=5 // pred_check
        %p190 = pneg %p189
      $region30: #{tpu_custom_call.1} parent=5 // pred_check_branch
        %192 = sbr.rel (%p190) target = $region32
      $region31: #{tpu_custom_call.1} parent=5 // pred_region
        // Predicated region
        $region33: #{tpu_custom_call.1} parent=31 // pred_check
          %p193 = pneg %p38
        $region34: #{tpu_custom_call.1} parent=31 // pred_check_branch
          %195 = sbr.rel (%p193) target = $region36
        $region35: #{tpu_custom_call.1} parent=31 // pred_region
          %s196 = sand.u32 %s28, 1
          %s197 = scalar_lea.sflag [#allocation3], %s196
          %s198 = sand.u32 %s28, 1
          %s199 = smul.addr %s198, 4
          %s200 = scalar_lea.vmem [#allocation2], %s199
          %s202 = ssub.s32 64, 64
          %203 = vsyncadd %s197, %s202
          %s204 = smul.addr %s18, 64
          %s205 = scalar_lea.hbm %s0, %s204
          %s207 = sshll.u32 %s200, 4
          %s208 = int_to_ptr.vmem [resolvable:$true] %s207
          %210 = dma.hbm_to_vmem [thread:$0]  %s205, 64, %s208, %s197
        $region36: #{tpu_custom_call.1} parent=31 // pred_fallthru
          _
      $region32: #{tpu_custom_call.1} parent=5 // pred_fallthru
        _
      %p211 = scmp.le.s32.totalorder 1, %s18
      %p212 = scmp.lt.s32.totalorder %s18, 3
      %p213 = pnand %p211, %p212
      %p214 = pneg %p213
      // Predicated region
      $region37: #{tpu_custom_call.1} parent=5 // pred_check
        _
      $region38: #{tpu_custom_call.1} parent=5 // pred_check_branch
        %216 = sbr.rel (%p213) target = $region40
      $region39: #{tpu_custom_call.1} parent=5 // pred_region
        %s217 = ssub.s32 %s18, 1
        %s218 = sand.u32 %s31, 1
        %s219 = scalar_lea.sflag [#allocation3], %s218
        %s220 = sand.u32 %s31, 1
        %s221 = smul.addr %s220, 4
        %s222 = scalar_lea.vmem [#allocation2], %s221
        // Predicated region
        $region41: #{tpu_custom_call.1} parent=39 // pred_check
          %p223 = pneg %p44
        $region42: #{tpu_custom_call.1} parent=39 // pred_check_branch
          %225 = sbr.rel (%p223) target = $region44
        $region43: #{tpu_custom_call.1} parent=39 // pred_region
          %226 = dma.done %s219, 64
        $region44: #{tpu_custom_call.1} parent=39 // pred_fallthru
          _
        // Predicated region
        $region45: #{tpu_custom_call.1} parent=39 // pred_check
          %p227 = pneg %p65
        $region46: #{tpu_custom_call.1} parent=39 // pred_check_branch
          %229 = sbr.rel (%p227) target = $region48
        $region47: #{tpu_custom_call.1} parent=39 // pred_region
          %230 = dma.done [#allocation6], 64
        $region48: #{tpu_custom_call.1} parent=39 // pred_fallthru
          _
        %s231 = sand.u32 %s31, 1
        %s232 = scalar_lea.sflag [#allocation3], %s231
        %s233 = sand.u32 %s31, 1
        %s234 = smul.addr %s233, 4
        %s235 = scalar_lea.vmem [#allocation2], %s234
        %p236 = pneg %p44
        %p237 = pneg %p41
        %p238 = pneg %p65
        %p239 = pneg %p62
        %p240 = pneg %p86
        %p241 = pneg %p83
        %p242 = pneg %p107
        %p243 = pneg %p104
        %p244 = pneg %p128
        %p245 = pneg %p125
        %p246 = pneg %p154
        %p247 = pneg %p151
        %s248 = sand.u32 %s141, 1
        %s249 = scalar_lea.sflag [#allocation4], %s248
        %s250 = sand.u32 %s141, 1
        %s251 = smul.addr %s250, 4
        %s252 = scalar_lea.vmem [#allocation7], %s251
        %v253 = vld [vmem:[%s222] sm:$0xf]
        %v254 = vunpack.c.l.bf16 %v253
        %v255 = vld [vmem:[#allocation5] sm:$0xf]
        %v256 = vunpack.c.l.bf16 %v255
        %v257 = vadd.f32 %v254, %v256
        %v258 = vld [vmem:[%s2] sm:$0x1]
        %v259 = vunpack.c.l.bf16 %v258
        %v260 = vlaneseq
        %v261 = vshrl.u32 %v260, 7
        %v262 = vsub.s32 0, %v261
        %v263 = vrot.slane %v259, %v262
        %v264 = vadd.f32 %v257, %v263
        %vm265 = vcmask 261120
        %v266 = vsel %vm265, %v264, 0.0
        %267 = vadd.xlane.f32.xlu0 %v266
        %v268 = vpop.xlane.xlu0 %267
        %v269 = vrcp.pop 32.0
        %v270 = vmul.f32 %v268, %v269
        %v271 = vsub.f32 %v264, %v270
        %v272 = vmul.f32 %v271, %v271
        %v273 = vsel %vm265, %v272, 0.0
        %274 = vadd.xlane.f32.xlu0 %v273
        %v275 = vpop.xlane.xlu0 %274
        %v276 = vmul.f32 %v275, %v269
        %v277 = vadd.f32 %v276, 1e-12
        %v278 = vrsqrt.pop %v277
        %v279 = vmul.f32 %v271, %v278
        %v280 = vld [vmem:[%s3] sm:$0x1]
        %v281 = vunpack.c.l.bf16 %v280
        %v282 = vlaneseq
        %v283 = vshrl.u32 %v282, 7
        %v284 = vsub.s32 0, %v283
        %v285 = vrot.slane %v281, %v284
        %v286 = vmul.f32 %v279, %v285
        %v287 = vld [vmem:[%s4] sm:$0x1]
        %v288 = vunpack.c.l.bf16 %v287
        %v289 = vlaneseq
        %v290 = vshrl.u32 %v289, 7
        %v291 = vsub.s32 0, %v290
        %v292 = vrot.slane %v288, %v291
        %v293 = vadd.f32 %v286, %v292
        %v294 = vpack.c.bf16 %v293, %v293
        %vm295 = vcmask 257024
        %296 = vst.msk [vmem:[%s252] sm:$0xf] %vm295, %v294
        %s297 = sand.u32 %s141, 1
        %s298 = scalar_lea.sflag [#allocation4], %s297
        %s299 = sand.u32 %s141, 1
        %s300 = smul.addr %s299, 4
        %s301 = scalar_lea.vmem [#allocation7], %s300
        // Predicated region
        $region49: #{tpu_custom_call.1} parent=39 // pred_check
          %p302 = pneg %p151
        $region50: #{tpu_custom_call.1} parent=39 // pred_check_branch
          %304 = sbr.rel (%p302) target = $region52
        $region51: #{tpu_custom_call.1} parent=39 // pred_region
          %s306 = ssub.s32 64, 64
          %307 = vsyncadd %s298, %s306
          %s308 = smul.addr %s23, 64
          %s309 = scalar_lea.hbm %s5, %s308
          %s311 = sshll.u32 %s301, 4
          %s312 = int_to_ptr.vmem [resolvable:$true] %s311
          %314 = dma.vmem_to_hbm [thread:$0]  %s312, 64, %s309, %s298
        $region52: #{tpu_custom_call.1} parent=39 // pred_fallthru
          _
      $region40: #{tpu_custom_call.1} parent=5 // pred_fallthru
        _
      %p315 = scmp.le.s32.totalorder 2, %s18
      // Predicated region
      $region53: #{tpu_custom_call.1} parent=5 // pred_check
        %p316 = pneg %p315
      $region54: #{tpu_custom_call.1} parent=5 // pred_check_branch
        %318 = sbr.rel (%p316) target = $region56
      $region55: #{tpu_custom_call.1} parent=5 // pred_region
        %s319 = ssub.s32 %s18, 2
        // Predicated region
        $region57: #{tpu_custom_call.1} parent=55 // pred_check
          %p320 = pneg %p157
        $region58: #{tpu_custom_call.1} parent=55 // pred_check_branch
          %322 = sbr.rel (%p320) target = $region60
        $region59: #{tpu_custom_call.1} parent=55 // pred_region
          %s323 = sand.u32 %s142, 1
          %s324 = scalar_lea.sflag [#allocation4], %s323
          %s325 = sand.u32 %s142, 1
          %s326 = smul.addr %s325, 4
          %s327 = scalar_lea.vmem [#allocation7], %s326
          %328 = dma.done %s324, 64
        $region60: #{tpu_custom_call.1} parent=55 // pred_fallthru
          _
      $region56: #{tpu_custom_call.1} parent=5 // pred_fallthru
        _
    $region6: #{tpu_custom_call.1} parent=1 // loop_footer
      %s22 = sadd.s32 1, %s18
    $region7: #{tpu_custom_call.1} parent=1 // loop_footer_branch
      %17 = sbr.rel target = $region3
    $region8: #{tpu_custom_call.1} parent=1 // loop_exit
      _
    %329 = vsyncpa [#allocation3], 1
    %s330 = scalar_lea.sflag [#allocation3], 1
    %331 = vsyncpa %s330, 1
    %332 = vsyncpa [#allocation6], 1
    %333 = vsyncpa [#allocation4], 1
    %s334 = scalar_lea.sflag [#allocation4], 1
    %335 = vsyncpa %s334, 1

</llo_original>
